<compile_context>
chip_gen: v7x
topology: tpu7x:2x2x1
jax: 0.10.0
libtpu: 0.0.40
codegen_flags: <defaults>
</compile_context>

<pallas_src>
import functools

import jax
import jax.numpy as jnp
from jax import lax
from jax.experimental import pallas as pl
from jax.experimental.pallas import tpu as pltpu


def _spatial_attention_kernel(w_ref, x_ref, o_ref, sum_ref, max_ref, *, ksize):
    # w_ref  : SMEM (2*ksize*ksize,) f32 -- [avg-channel weights pre-scaled by 1/C,
    #                                        then max-channel weights], row-major (kh,kw).
    # x_ref  : VMEM (1, Ct, H, W) -- current channel chunk of one batch element.
    # o_ref  : VMEM (1, 1, H, W)  -- output block (resident across the channel axis).
    # sum_ref/max_ref : VMEM (H, W) f32 scratch accumulators (persist across grid steps).
    c_idx = pl.program_id(1)
    n_c = pl.num_programs(1)

    ct = x_ref.shape[1]
    H, W = x_ref.shape[2], x_ref.shape[3]
    pad = ksize // 2

    @pl.when(c_idx == 0)
    def _():
        sum_ref[...] = jnp.zeros_like(sum_ref)
        max_ref[...] = jnp.full_like(max_ref, -jnp.inf)

    # ---- fused single-pass channel reduction for this chunk (sum & max together) ----
    s = sum_ref[...]
    m = max_ref[...]
    if ct <= 16:
        # fully unrolled, static channel indices
        for i in range(ct):
            xi = x_ref[0, i].astype(jnp.float32)
            s = s + xi
            m = jnp.maximum(m, xi)
    else:
        def body(i, carry):
            cs, cm = carry
            xi = x_ref[0, i].astype(jnp.float32)
            return cs + xi, jnp.maximum(cm, xi)

        s, m = lax.fori_loop(0, ct, body, (s, m))
    sum_ref[...] = s
    max_ref[...] = m

    # ---- last chunk: 2->1 KxK conv with SAME zero padding, then store ----
    @pl.when(c_idx == n_c - 1)
    def _():
        ii = lax.broadcasted_iota(jnp.int32, (H, W), 0)
        jj = lax.broadcasted_iota(jnp.int32, (H, W), 1)
        # Boundary-validity masks, hoisted once and shared across both feature channels.
        row_ok = {d: None if d == 0 else ((ii + d >= 0) & (ii + d < H))
                  for d in range(-pad, pad + 1)}
        col_ok = {d: None if d == 0 else ((jj + d >= 0) & (jj + d < W))
                  for d in range(-pad, pad + 1)}

        acc = jnp.zeros((H, W), jnp.float32)
        for kh in range(ksize):
            dh = kh - pad
            if dh == 0:
                s_h, m_h = s, m
            else:  # sublane roll, shared by all kw taps of this row
                s_h = pltpu.roll(s, shift=(-dh) % H, axis=0)
                m_h = pltpu.roll(m, shift=(-dh) % H, axis=0)
            for kw in range(ksize):
                dw = kw - pad
                if dw == 0:
                    s_t, m_t = s_h, m_h
                else:  # lane roll
                    s_t = pltpu.roll(s_h, shift=(-dw) % W, axis=1)
                    m_t = pltpu.roll(m_h, shift=(-dw) % W, axis=1)
                k = kh * ksize + kw
                tap = w_ref[k] * s_t + w_ref[ksize * ksize + k] * m_t
                parts = [p for p in (row_ok[dh], col_ok[dw]) if p is not None]
                if parts:
                    msk = parts[0] if len(parts) == 1 else (parts[0] & parts[1])
                    tap = jnp.where(msk, tap, 0.0)
                acc = acc + tap
        o_ref[0, 0] = acc.astype(o_ref.dtype)


def _pick_channel_chunk(C, H, W, itemsize, budget_bytes):
    """Largest divisor of C whose (Ct, H, W) slab fits the per-buffer VMEM budget."""
    plane = max(1, H * W * itemsize)
    cap = max(1, min(C, budget_bytes // plane))
    for ct in range(cap, 0, -1):
        if C % ct == 0:
            return ct
    return 1


def spatial_attention(x, w, *, ct=None, in_block_budget_bytes=8 * 1024 * 1024):
    """x: (B, C, H, W) float (f32 or bf16); w: (1, 2, K, K) conv weight (OIHW, no bias).
    Returns conv(concat([mean_c(x), max_c(x)], axis=1)), shape (B, 1, H, W)."""
    B, C, H, W = x.shape
    K = w.shape[-1]
    assert w.shape == (1, 2, K, K), w.shape

    itemsize = jnp.dtype(x.dtype).itemsize
    if ct is None:
        ct = _pick_channel_chunk(C, H, W, itemsize, in_block_budget_bytes)
    assert C % ct == 0, (C, ct)
    n_c = C // ct

    # Fold the 1/C of the channel mean into the avg-channel weights so the kernel only
    # needs a running sum.  Layout: [avg weights (K*K), max weights (K*K)].
    w = w.astype(jnp.float32)
    w_flat = jnp.concatenate([w[0, 0].reshape(-1) / C, w[0, 1].reshape(-1)])

    # VMEM sizing: double-buffered input block + resident output block + scratch.
    in_block = ct * H * W * itemsize
    out_block = H * W * itemsize
    scratch = 2 * H * W * 4
    vmem_need = 2 * in_block + 2 * out_block + scratch
    vmem_limit = int(min(max(2 * vmem_need + (2 << 20), 32 << 20), 64 << 20))

    kernel = functools.partial(_spatial_attention_kernel, ksize=K)

    return pl.pallas_call(
        kernel,
        out_shape=jax.ShapeDtypeStruct((B, 1, H, W), x.dtype),
        grid_spec=pltpu.PrefetchScalarGridSpec(
            num_scalar_prefetch=0,
            grid=(B, n_c),
            in_specs=[
                pl.BlockSpec(memory_space=pltpu.MemorySpace.SMEM),        # conv weights
                pl.BlockSpec((1, ct, H, W), lambda b, c: (b, c, 0, 0)),   # channel chunk
            ],
            out_specs=pl.BlockSpec((1, 1, H, W), lambda b, c: (b, 0, 0, 0)),
            scratch_shapes=[
                pltpu.VMEM((H, W), jnp.float32),   # running channel sum
                pltpu.VMEM((H, W), jnp.float32),   # running channel max
            ],
        ),
        compiler_params=pltpu.CompilerParams(
            # batch axis parallel (megacore / v7x dual-TC); channel axis is a reduction.
            dimension_semantics=("parallel", "arbitrary"),
            vmem_limit_bytes=vmem_limit,
        ),
    )(w_flat, x)


def reference(x, w):
    avg = jnp.mean(x, axis=1, keepdims=True)
    mx = jnp.max(x, axis=1, keepdims=True)
    f = jnp.concatenate([avg, mx], axis=1)                 # (B, 2, H, W)
    return lax.conv_general_dilated(
        f, w.astype(f.dtype), window_strides=(1, 1), padding="SAME",
        dimension_numbers=("NCHW", "OIHW", "NCHW"))


if __name__ == "__main__":
    key = jax.random.PRNGKey(0)
    kx, kw = jax.random.split(key)

    B, C, H, W = 2, 4, 16, 16
    K = 3
    x = jax.random.normal(kx, (B, C, H, W), dtype=jnp.float32)

    # PyTorch-default-ish conv weight init (bound = 1/sqrt(fan_in)), no bias.
    fan_in = 2 * K * K
    bound = 1.0 / (fan_in ** 0.5)
    w = jax.random.uniform(kw, (1, 2, K, K), minval=-bound, maxval=bound,
                           dtype=jnp.float32)

    ref = reference(x, w)

    # Multi-chunk path (Ct=2 -> two channel chunks; exercises the running sum/max scratch).
    out = jax.block_until_ready(spatial_attention(x, w, ct=2))
    assert out.shape == (B, 1, H, W), out.shape
    assert jnp.allclose(out, ref, atol=1e-5, rtol=1e-5), float(jnp.max(jnp.abs(out - ref)))

    # Single-chunk path (auto Ct = C).
    out2 = jax.block_until_ready(spatial_attention(x, w))
    assert jnp.allclose(out2, ref, atol=1e-5, rtol=1e-5), float(jnp.max(jnp.abs(out2 - ref)))

    print("KERNEL_OK")
</pallas_src>

<mosaic_0001>
module attributes {stable_mosaic.version = 11 : i64} {
  func.func @_spatial_attention_kernel(%arg0: i32, %arg1: i32, %arg2: memref<18xf32, #tpu.memory_space<smem>>, %arg3: memref<1x2x16x16xf32, #tpu.memory_space<vmem>>, %arg4: memref<1x1x16x16xf32, #tpu.memory_space<vmem>>, %arg5: memref<16x16xf32, #tpu.memory_space<vmem>>, %arg6: memref<16x16xf32, #tpu.memory_space<vmem>>) attributes {dimension_semantics = [#tpu.dimension_semantics<parallel>, #tpu.dimension_semantics<arbitrary>], iteration_bounds = array<i64: 2, 2>, scalar_prefetch = 0 : i64, scratch_operands = 2 : i64, tpu.core_type = #tpu.core_type<tc>, window_params = [{transform_indices = @transform_0, window_bounds = array<i64: 18>}, {transform_indices = @transform_1, window_bounds = array<i64: 1, 2, 16, 16>}, {transform_indices = @transform_2, window_bounds = array<i64: 1, 1, 16, 16>}]} {
    %c0_i32 = arith.constant 0 : i32
    %0 = arith.cmpi eq, %arg1, %c0_i32 : i32
    %1 = arith.extui %0 : i1 to i32
    %c0_i32_0 = arith.constant 0 : i32
    %2 = arith.cmpi ne, %1, %c0_i32_0 : i32
    scf.if %2 {
      %cst = arith.constant 0.000000e+00 : f32
      %18 = vector.broadcast %cst : f32 to vector<16x16xf32>
      %c0_16 = arith.constant 0 : index
      %c0_17 = arith.constant 0 : index
      %19 = vector.load %arg5[%c0_16, %c0_17] : memref<16x16xf32, #tpu.memory_space<vmem>>, vector<16x16xf32>
      tpu.vector_store %arg5[%c0_16, %c0_17], %18 {strides = array<i32>} : memref<16x16xf32, #tpu.memory_space<vmem>>, vector<16x16xf32>,
      %cst_18 = arith.constant 0xFF800000 : f32
      %20 = vector.broadcast %cst_18 : f32 to vector<16x16xf32>
      %c0_19 = arith.constant 0 : index
      %c0_20 = arith.constant 0 : index
      %21 = vector.load %arg6[%c0_19, %c0_20] : memref<16x16xf32, #tpu.memory_space<vmem>>, vector<16x16xf32>
      tpu.vector_store %arg6[%c0_19, %c0_20], %20 {strides = array<i32>} : memref<16x16xf32, #tpu.memory_space<vmem>>, vector<16x16xf32>,
    } else {
    }
    %c0 = arith.constant 0 : index
    %c0_1 = arith.constant 0 : index
    %3 = vector.load %arg5[%c0, %c0_1] : memref<16x16xf32, #tpu.memory_space<vmem>>, vector<16x16xf32>
    %c0_2 = arith.constant 0 : index
    %c0_3 = arith.constant 0 : index
    %4 = vector.load %arg6[%c0_2, %c0_3] : memref<16x16xf32, #tpu.memory_space<vmem>>, vector<16x16xf32>
    %c0_4 = arith.constant 0 : index
    %c0_5 = arith.constant 0 : index
    %c0_6 = arith.constant 0 : index
    %c0_7 = arith.constant 0 : index
    %5 = vector.load %arg3[%c0_4, %c0_5, %c0_6, %c0_7] : memref<1x2x16x16xf32, #tpu.memory_space<vmem>>, vector<1x1x16x16xf32>
    %6 = vector.shape_cast %5 : vector<1x1x16x16xf32> to vector<16x16xf32>
    %7 = arith.addf %3, %6 : vector<16x16xf32>
    %8 = arith.maximumf %4, %6 : vector<16x16xf32>
    %c0_8 = arith.constant 0 : index
    %c1 = arith.constant 1 : index
    %c0_9 = arith.constant 0 : index
    %c0_10 = arith.constant 0 : index
    %9 = vector.load %arg3[%c0_8, %c1, %c0_9, %c0_10] : memref<1x2x16x16xf32, #tpu.memory_space<vmem>>, vector<1x1x16x16xf32>
    %10 = vector.shape_cast %9 : vector<1x1x16x16xf32> to vector<16x16xf32>
    %11 = arith.addf %7, %10 : vector<16x16xf32>
    %12 = arith.maximumf %8, %10 : vector<16x16xf32>
    %c0_11 = arith.constant 0 : index
    %c0_12 = arith.constant 0 : index
    %13 = vector.load %arg5[%c0_11, %c0_12] : memref<16x16xf32, #tpu.memory_space<vmem>>, vector<16x16xf32>
    tpu.vector_store %arg5[%c0_11, %c0_12], %11 {strides = array<i32>} : memref<16x16xf32, #tpu.memory_space<vmem>>, vector<16x16xf32>,
    %c0_13 = arith.constant 0 : index
    %c0_14 = arith.constant 0 : index
    %14 = vector.load %arg6[%c0_13, %c0_14] : memref<16x16xf32, #tpu.memory_space<vmem>>, vector<16x16xf32>
    tpu.vector_store %arg6[%c0_13, %c0_14], %12 {strides = array<i32>} : memref<16x16xf32, #tpu.memory_space<vmem>>, vector<16x16xf32>,
    %c1_i32 = arith.constant 1 : i32
    %15 = arith.cmpi eq, %arg1, %c1_i32 : i32
    %16 = arith.extui %15 : i1 to i32
    %c0_i32_15 = arith.constant 0 : i32
    %17 = arith.cmpi ne, %16, %c0_i32_15 : i32
    scf.if %17 {
      %18 = tpu.iota {dimensions = array<i32: 0>} : vector<16x16xi32>
      %19 = tpu.iota {dimensions = array<i32: 1>} : vector<16x16xi32>
      %c-1_i32 = arith.constant -1 : i32
      %20 = vector.broadcast %c-1_i32 : i32 to vector<16x16xi32>
      %21 = arith.addi %18, %20 : vector<16x16xi32>
      %c0_i32_16 = arith.constant 0 : i32
      %22 = vector.broadcast %c0_i32_16 : i32 to vector<16x16xi32>
      %23 = arith.cmpi sge, %21, %22 : vector<16x16xi32>
      %c-1_i32_17 = arith.constant -1 : i32
      %24 = vector.broadcast %c-1_i32_17 : i32 to vector<16x16xi32>
      %25 = arith.addi %18, %24 : vector<16x16xi32>
      %c16_i32 = arith.constant 16 : i32
      %26 = vector.broadcast %c16_i32 : i32 to vector<16x16xi32>
      %27 = arith.cmpi slt, %25, %26 : vector<16x16xi32>
      %28 = arith.andi %23, %27 : vector<16x16xi1>
      %c1_i32_18 = arith.constant 1 : i32
      %29 = vector.broadcast %c1_i32_18 : i32 to vector<16x16xi32>
      %30 = arith.addi %18, %29 : vector<16x16xi32>
      %c0_i32_19 = arith.constant 0 : i32
      %31 = vector.broadcast %c0_i32_19 : i32 to vector<16x16xi32>
      %32 = arith.cmpi sge, %30, %31 : vector<16x16xi32>
      %c1_i32_20 = arith.constant 1 : i32
      %33 = vector.broadcast %c1_i32_20 : i32 to vector<16x16xi32>
      %34 = arith.addi %18, %33 : vector<16x16xi32>
      %c16_i32_21 = arith.constant 16 : i32
      %35 = vector.broadcast %c16_i32_21 : i32 to vector<16x16xi32>
      %36 = arith.cmpi slt, %34, %35 : vector<16x16xi32>
      %37 = arith.andi %32, %36 : vector<16x16xi1>
      %c-1_i32_22 = arith.constant -1 : i32
      %38 = vector.broadcast %c-1_i32_22 : i32 to vector<16x16xi32>
      %39 = arith.addi %19, %38 : vector<16x16xi32>
      %c0_i32_23 = arith.constant 0 : i32
      %40 = vector.broadcast %c0_i32_23 : i32 to vector<16x16xi32>
      %41 = arith.cmpi sge, %39, %40 : vector<16x16xi32>
      %c-1_i32_24 = arith.constant -1 : i32
      %42 = vector.broadcast %c-1_i32_24 : i32 to vector<16x16xi32>
      %43 = arith.addi %19, %42 : vector<16x16xi32>
      %c16_i32_25 = arith.constant 16 : i32
      %44 = vector.broadcast %c16_i32_25 : i32 to vector<16x16xi32>
      %45 = arith.cmpi slt, %43, %44 : vector<16x16xi32>
      %46 = arith.andi %41, %45 : vector<16x16xi1>
      %c1_i32_26 = arith.constant 1 : i32
      %47 = vector.broadcast %c1_i32_26 : i32 to vector<16x16xi32>
      %48 = arith.addi %19, %47 : vector<16x16xi32>
      %c0_i32_27 = arith.constant 0 : i32
      %49 = vector.broadcast %c0_i32_27 : i32 to vector<16x16xi32>
      %50 = arith.cmpi sge, %48, %49 : vector<16x16xi32>
      %c1_i32_28 = arith.constant 1 : i32
      %51 = vector.broadcast %c1_i32_28 : i32 to vector<16x16xi32>
      %52 = arith.addi %19, %51 : vector<16x16xi32>
      %c16_i32_29 = arith.constant 16 : i32
      %53 = vector.broadcast %c16_i32_29 : i32 to vector<16x16xi32>
      %54 = arith.cmpi slt, %52, %53 : vector<16x16xi32>
      %55 = arith.andi %50, %54 : vector<16x16xi1>
      %cst = arith.constant 0.000000e+00 : f32
      %56 = vector.broadcast %cst : f32 to vector<16x16xf32>
      %c1_i32_30 = arith.constant 1 : i32
      %57 = tpu.dynamic_rotate %11 by %c1_i32_30 dim 0 : vector<16x16xf32>, i32 -> vector<16x16xf32>
      %c1_i32_31 = arith.constant 1 : i32
      %58 = tpu.dynamic_rotate %12 by %c1_i32_31 dim 0 : vector<16x16xf32>, i32 -> vector<16x16xf32>
      %c1_i32_32 = arith.constant 1 : i32
      %59 = tpu.dynamic_rotate %57 by %c1_i32_32 dim 1 : vector<16x16xf32>, i32 -> vector<16x16xf32>
      %c1_i32_33 = arith.constant 1 : i32
      %60 = tpu.dynamic_rotate %58 by %c1_i32_33 dim 1 : vector<16x16xf32>, i32 -> vector<16x16xf32>
      %c0_34 = arith.constant 0 : index
      %61 = memref.load %arg2[%c0_34] : memref<18xf32, #tpu.memory_space<smem>>
      %62 = vector.broadcast %61 : f32 to vector<16x16xf32>
      %63 = arith.mulf %62, %59 : vector<16x16xf32>
      %c9 = arith.constant 9 : index
      %64 = memref.load %arg2[%c9] : memref<18xf32, #tpu.memory_space<smem>>
      %65 = vector.broadcast %64 : f32 to vector<16x16xf32>
      %66 = arith.mulf %65, %60 : vector<16x16xf32>
      %67 = arith.addf %63, %66 : vector<16x16xf32>
      %68 = arith.andi %28, %46 : vector<16x16xi1>
      %cst_35 = arith.constant 0.000000e+00 : f32
      %69 = vector.broadcast %cst_35 : f32 to vector<16x16xf32>
      %70 = arith.select %68, %67, %69 : vector<16x16xi1>, vector<16x16xf32>
      %71 = arith.addf %56, %70 : vector<16x16xf32>
      %c1_36 = arith.constant 1 : index
      %72 = memref.load %arg2[%c1_36] : memref<18xf32, #tpu.memory_space<smem>>
      %73 = vector.broadcast %72 : f32 to vector<16x16xf32>
      %74 = arith.mulf %73, %57 : vector<16x16xf32>
      %c10 = arith.constant 10 : index
      %75 = memref.load %arg2[%c10] : memref<18xf32, #tpu.memory_space<smem>>
      %76 = vector.broadcast %75 : f32 to vector<16x16xf32>
      %77 = arith.mulf %76, %58 : vector<16x16xf32>
      %78 = arith.addf %74, %77 : vector<16x16xf32>
      %cst_37 = arith.constant 0.000000e+00 : f32
      %79 = vector.broadcast %cst_37 : f32 to vector<16x16xf32>
      %80 = arith.select %28, %78, %79 : vector<16x16xi1>, vector<16x16xf32>
      %81 = arith.addf %71, %80 : vector<16x16xf32>
      %c15_i32 = arith.constant 15 : i32
      %82 = tpu.dynamic_rotate %57 by %c15_i32 dim 1 : vector<16x16xf32>, i32 -> vector<16x16xf32>
      %c15_i32_38 = arith.constant 15 : i32
      %83 = tpu.dynamic_rotate %58 by %c15_i32_38 dim 1 : vector<16x16xf32>, i32 -> vector<16x16xf32>
      %c2 = arith.constant 2 : index
      %84 = memref.load %arg2[%c2] : memref<18xf32, #tpu.memory_space<smem>>
      %85 = vector.broadcast %84 : f32 to vector<16x16xf32>
      %86 = arith.mulf %85, %82 : vector<16x16xf32>
      %c11 = arith.constant 11 : index
      %87 = memref.load %arg2[%c11] : memref<18xf32, #tpu.memory_space<smem>>
      %88 = vector.broadcast %87 : f32 to vector<16x16xf32>
      %89 = arith.mulf %88, %83 : vector<16x16xf32>
      %90 = arith.addf %86, %89 : vector<16x16xf32>
      %91 = arith.andi %28, %55 : vector<16x16xi1>
      %cst_39 = arith.constant 0.000000e+00 : f32
      %92 = vector.broadcast %cst_39 : f32 to vector<16x16xf32>
      %93 = arith.select %91, %90, %92 : vector<16x16xi1>, vector<16x16xf32>
      %94 = arith.addf %81, %93 : vector<16x16xf32>
      %c1_i32_40 = arith.constant 1 : i32
      %95 = tpu.dynamic_rotate %11 by %c1_i32_40 dim 1 : vector<16x16xf32>, i32 -> vector<16x16xf32>
      %c1_i32_41 = arith.constant 1 : i32
      %96 = tpu.dynamic_rotate %12 by %c1_i32_41 dim 1 : vector<16x16xf32>, i32 -> vector<16x16xf32>
      %c3 = arith.constant 3 : index
      %97 = memref.load %arg2[%c3] : memref<18xf32, #tpu.memory_space<smem>>
      %98 = vector.broadcast %97 : f32 to vector<16x16xf32>
      %99 = arith.mulf %98, %95 : vector<16x16xf32>
      %c12 = arith.constant 12 : index
      %100 = memref.load %arg2[%c12] : memref<18xf32, #tpu.memory_space<smem>>
      %101 = vector.broadcast %100 : f32 to vector<16x16xf32>
      %102 = arith.mulf %101, %96 : vector<16x16xf32>
      %103 = arith.addf %99, %102 : vector<16x16xf32>
      %cst_42 = arith.constant 0.000000e+00 : f32
      %104 = vector.broadcast %cst_42 : f32 to vector<16x16xf32>
      %105 = arith.select %46, %103, %104 : vector<16x16xi1>, vector<16x16xf32>
      %106 = arith.addf %94, %105 : vector<16x16xf32>
      %c4 = arith.constant 4 : index
      %107 = memref.load %arg2[%c4] : memref<18xf32, #tpu.memory_space<smem>>
      %108 = vector.broadcast %107 : f32 to vector<16x16xf32>
      %109 = arith.mulf %108, %11 : vector<16x16xf32>
      %c13 = arith.constant 13 : index
      %110 = memref.load %arg2[%c13] : memref<18xf32, #tpu.memory_space<smem>>
      %111 = vector.broadcast %110 : f32 to vector<16x16xf32>
      %112 = arith.mulf %111, %12 : vector<16x16xf32>
      %113 = arith.addf %109, %112 : vector<16x16xf32>
      %114 = arith.addf %106, %113 : vector<16x16xf32>
      %c15_i32_43 = arith.constant 15 : i32
      %115 = tpu.dynamic_rotate %11 by %c15_i32_43 dim 1 : vector<16x16xf32>, i32 -> vector<16x16xf32>
      %c15_i32_44 = arith.constant 15 : i32
      %116 = tpu.dynamic_rotate %12 by %c15_i32_44 dim 1 : vector<16x16xf32>, i32 -> vector<16x16xf32>
      %c5 = arith.constant 5 : index
      %117 = memref.load %arg2[%c5] : memref<18xf32, #tpu.memory_space<smem>>
      %118 = vector.broadcast %117 : f32 to vector<16x16xf32>
      %119 = arith.mulf %118, %115 : vector<16x16xf32>
      %c14 = arith.constant 14 : index
      %120 = memref.load %arg2[%c14] : memref<18xf32, #tpu.memory_space<smem>>
      %121 = vector.broadcast %120 : f32 to vector<16x16xf32>
      %122 = arith.mulf %121, %116 : vector<16x16xf32>
      %123 = arith.addf %119, %122 : vector<16x16xf32>
      %cst_45 = arith.constant 0.000000e+00 : f32
      %124 = vector.broadcast %cst_45 : f32 to vector<16x16xf32>
      %125 = arith.select %55, %123, %124 : vector<16x16xi1>, vector<16x16xf32>
      %126 = arith.addf %114, %125 : vector<16x16xf32>
      %c15_i32_46 = arith.constant 15 : i32
      %127 = tpu.dynamic_rotate %11 by %c15_i32_46 dim 0 : vector<16x16xf32>, i32 -> vector<16x16xf32>
      %c15_i32_47 = arith.constant 15 : i32
      %128 = tpu.dynamic_rotate %12 by %c15_i32_47 dim 0 : vector<16x16xf32>, i32 -> vector<16x16xf32>
      %c1_i32_48 = arith.constant 1 : i32
      %129 = tpu.dynamic_rotate %127 by %c1_i32_48 dim 1 : vector<16x16xf32>, i32 -> vector<16x16xf32>
      %c1_i32_49 = arith.constant 1 : i32
      %130 = tpu.dynamic_rotate %128 by %c1_i32_49 dim 1 : vector<16x16xf32>, i32 -> vector<16x16xf32>
      %c6 = arith.constant 6 : index
      %131 = memref.load %arg2[%c6] : memref<18xf32, #tpu.memory_space<smem>>
      %132 = vector.broadcast %131 : f32 to vector<16x16xf32>
      %133 = arith.mulf %132, %129 : vector<16x16xf32>
      %c15 = arith.constant 15 : index
      %134 = memref.load %arg2[%c15] : memref<18xf32, #tpu.memory_space<smem>>
      %135 = vector.broadcast %134 : f32 to vector<16x16xf32>
      %136 = arith.mulf %135, %130 : vector<16x16xf32>
      %137 = arith.addf %133, %136 : vector<16x16xf32>
      %138 = arith.andi %37, %46 : vector<16x16xi1>
      %cst_50 = arith.constant 0.000000e+00 : f32
      %139 = vector.broadcast %cst_50 : f32 to vector<16x16xf32>
      %140 = arith.select %138, %137, %139 : vector<16x16xi1>, vector<16x16xf32>
      %141 = arith.addf %126, %140 : vector<16x16xf32>
      %c7 = arith.constant 7 : index
      %142 = memref.load %arg2[%c7] : memref<18xf32, #tpu.memory_space<smem>>
      %143 = vector.broadcast %142 : f32 to vector<16x16xf32>
      %144 = arith.mulf %143, %127 : vector<16x16xf32>
      %c16 = arith.constant 16 : index
      %145 = memref.load %arg2[%c16] : memref<18xf32, #tpu.memory_space<smem>>
      %146 = vector.broadcast %145 : f32 to vector<16x16xf32>
      %147 = arith.mulf %146, %128 : vector<16x16xf32>
      %148 = arith.addf %144, %147 : vector<16x16xf32>
      %cst_51 = arith.constant 0.000000e+00 : f32
      %149 = vector.broadcast %cst_51 : f32 to vector<16x16xf32>
      %150 = arith.select %37, %148, %149 : vector<16x16xi1>, vector<16x16xf32>
      %151 = arith.addf %141, %150 : vector<16x16xf32>
      %c15_i32_52 = arith.constant 15 : i32
      %152 = tpu.dynamic_rotate %127 by %c15_i32_52 dim 1 : vector<16x16xf32>, i32 -> vector<16x16xf32>
      %c15_i32_53 = arith.constant 15 : i32
      %153 = tpu.dynamic_rotate %128 by %c15_i32_53 dim 1 : vector<16x16xf32>, i32 -> vector<16x16xf32>
      %c8 = arith.constant 8 : index
      %154 = memref.load %arg2[%c8] : memref<18xf32, #tpu.memory_space<smem>>
      %155 = vector.broadcast %154 : f32 to vector<16x16xf32>
      %156 = arith.mulf %155, %152 : vector<16x16xf32>
      %c17 = arith.constant 17 : index
      %157 = memref.load %arg2[%c17] : memref<18xf32, #tpu.memory_space<smem>>
      %158 = vector.broadcast %157 : f32 to vector<16x16xf32>
      %159 = arith.mulf %158, %153 : vector<16x16xf32>
      %160 = arith.addf %156, %159 : vector<16x16xf32>
      %161 = arith.andi %37, %55 : vector<16x16xi1>
      %cst_54 = arith.constant 0.000000e+00 : f32
      %162 = vector.broadcast %cst_54 : f32 to vector<16x16xf32>
      %163 = arith.select %161, %160, %162 : vector<16x16xi1>, vector<16x16xf32>
      %164 = arith.addf %151, %163 : vector<16x16xf32>
      %c0_55 = arith.constant 0 : index
      %c0_56 = arith.constant 0 : index
      %c0_57 = arith.constant 0 : index
      %c0_58 = arith.constant 0 : index
      %165 = vector.load %arg4[%c0_55, %c0_56, %c0_57, %c0_58] : memref<1x1x16x16xf32, #tpu.memory_space<vmem>>, vector<1x1x16x16xf32>
      %166 = vector.shape_cast %165 : vector<1x1x16x16xf32> to vector<16x16xf32>
      %167 = vector.shape_cast %164 : vector<16x16xf32> to vector<1x1x16x16xf32>
      tpu.vector_store %arg4[%c0_55, %c0_56, %c0_57, %c0_58], %167 {strides = array<i32>} : memref<1x1x16x16xf32, #tpu.memory_space<vmem>>, vector<1x1x16x16xf32>,
    } else {
    }
    return
  }
  func.func @transform_0(%arg0: i32, %arg1: i32) -> i32 {
    %c0_i32 = arith.constant 0 : i32
    %c0_i32_0 = arith.constant 0 : i32
    return %c0_i32 : i32
  }
  func.func @transform_1(%arg0: i32, %arg1: i32) -> (i32, i32, i32, i32) {
    %c0_i32 = arith.constant 0 : i32
    %c0_i32_0 = arith.constant 0 : i32
    %c0_i32_1 = arith.constant 0 : i32
    return %arg0, %arg1, %c0_i32, %c0_i32_0 : i32, i32, i32, i32
  }
  func.func @transform_2(%arg0: i32, %arg1: i32) -> (i32, i32, i32, i32) {
    %c0_i32 = arith.constant 0 : i32
    %c0_i32_0 = arith.constant 0 : i32
    %c0_i32_1 = arith.constant 0 : i32
    %c0_i32_2 = arith.constant 0 : i32
    return %arg0, %c0_i32, %c0_i32_0, %c0_i32_1 : i32, i32, i32, i32
  }
}

</mosaic_0001>

<llo_original>
// kernel: tpu_custom_call.1
$region0: #{tpu_custom_call.1}
  #allocation0 [shape = 'u32[]', space=smem, size = 0x4, offset = 0x4, fixed_abs, tag = 'smem constant byte address 0x4 - core index']
  #allocation1 [shape = 'u32[144,128]{1,0:T(1,128)}', space=vmem, size = 0x12000, scoped, tag = 'internal scratch']
  #allocation2 [shape = 'f32[16,16]{1,0:T(8,128)}', space=vmem, size = 0x2000, scoped, tag = 'scratch operand']
  #allocation3 [shape = 'f32[16,16]{1,0:T(8,128)}', space=vmem, size = 0x2000, scoped, tag = 'scratch operand']
  %s0 = inlined_call_operand.hbm [shape: f32[18], index: 0, kind: input, shape index: {}]
  %s1 = inlined_call_operand.hbm [shape: f32[2,4,16,16], index: 1, kind: input, shape index: {}]
  %s2 = inlined_call_operand.hbm [shape: f32[2,1,16,16], index: 2, kind: output, shape index: {}]
  %s3 = sld [smem:[#allocation0]]
  $region57: #{tpu_custom_call.1} parent=0
    _
  %s5 = ssub.s32 1, %s3
  %s6 = scalar_select 0, %s5, %s3
  $region1: #{tpu_custom_call.1} parent=0
    #allocation4 [shape = 'u8[512]{0}', space=smem, size = 0x200, scoped, tag = 'input window, operand 0, single buffered']
    #allocation5 [shape = 's32[2]{0}', space=sflag, size = 0x8, scoped, tag = 'scoped memory for tpu_custom_call.1']
    #allocation6 [shape = 's32[2]{0}', space=sflag, size = 0x8, scoped, tag = 'scoped memory for tpu_custom_call.1']
    #allocation7 [shape = 's32[2]{0}', space=sflag, size = 0x8, scoped, tag = 'scoped memory for tpu_custom_call.1']
    #allocation8 [shape = 'u8[32768]{0}', space=vmem, size = 0x8000, scoped, tag = 'input window, operand 1']
    #allocation9 [shape = 'u8[16384]{0}', space=vmem, size = 0x4000, scoped, tag = 'output window, operand 0']
    %7 = vsyncpa [#allocation7], 0
    %8 = vsyncpa [#allocation5], 0
    %s9 = scalar_lea.sflag [#allocation5], 1
    %10 = vsyncpa %s9, 0
    %11 = vsyncpa [#allocation6], 0
    %s12 = scalar_lea.sflag [#allocation6], 1
    %13 = vsyncpa %s12, 0
    loop: start=0, step=1, limit=6
    $region2: #{tpu_custom_call.1} parent=1 // loop_pre_header
      _
    $region3: #{tpu_custom_call.1} parent=1 // loop_header
      %s15 = sphi 0, %s19
      %p16 = scmp.ge.s32.totalorder %s15, 6
      %s22 = sphi 0, %s34
      %s23 = sphi 0, %s30
      %s24 = sphi 0, %s22
      %s25 = sphi 0, %s23
      %s26 = sphi 0, %s24
      %s27 = sphi 0, %s25
      %s35 = sphi 0, %s35
      %s37 = sphi 0, %s35
      %s38 = sphi 0, %s37
      %s52 = sphi 0, %s38
      %s60 = sphi 0, %s62
      %s63 = sphi 0, %s60
      %s64 = sphi 0, %s63
      %s80 = sphi 0, %s64
      %s86 = sphi 0, %s88
      %s89 = sphi 0, %s86
      %s90 = sphi 0, %s89
      %s106 = sphi 0, %s90
    $region4: #{tpu_custom_call.1} parent=1 // loop_header_branch
      %18 = sbr.rel (%p16) target = $region8
    $region5: #{tpu_custom_call.1} parent=1 // loop_body
      %s20 = ssub.s32 %s15, 1
      %s21 = ssub.s32 %s15, 2
      %s28 = sadd.s32 1, %s23
      %p29 = scmp.ge.s32.totalorder %s28, 2
      %s30 = scalar_select %p29, 0, %s28
      %s31 = sadd.s32 1, %s22
      %s32 = scalar_select %p29, %s31, %s22
      %p33 = scmp.ge.s32.totalorder %s32, 2
      %s34 = scalar_select %p33, 0, %s32
      %s36 = sadd.s32 %s35, 1
      %p39 = scmp.eq.s32.totalorder %s15, 3
      %p40 = scmp.ne.s32.totalorder %s35, %s37
      %p41 = scmp.eq.s32.totalorder %s15, 0
      %p42 = por %p40, %p41
      %p43 = scmp.ne.s32.totalorder %s35, %s37
      %p44 = scmp.eq.s32.totalorder %s20, 3
      %p45 = por %p43, %p44
      %p46 = scmp.ne.s32.totalorder %s37, %s38
      %p47 = scmp.eq.s32.totalorder %s20, 0
      %p48 = por %p46, %p47
      %p49 = scmp.ne.s32.totalorder %s37, %s38
      %p50 = scmp.eq.s32.totalorder %s21, 3
      %p51 = por %p49, %p50
      %p53 = scmp.ne.s32.totalorder %s38, %s52
      %p54 = scmp.eq.s32.totalorder %s21, 0
      %p55 = por %p53, %p54
      %s56 = ssub.s32 %s22, %s34
      %s57 = ssub.s32 %s23, %s30
      %s58 = sor.u32 %s56, %s57
      %p59 = scmp.eq.s32.totalorder %s58, 0
      %s61 = sadd.s32 %s60, 1
      %s62 = scalar_select %p59, %s60, %s61
      %p65 = pneg %p59
      %p66 = scmp.eq.s32.totalorder %s15, 3
      %p67 = por %p65, %p66
      %p68 = scmp.ne.s32.totalorder %s60, %s63
      %p69 = scmp.eq.s32.totalorder %s15, 0
      %p70 = por %p68, %p69
      %p71 = scmp.ne.s32.totalorder %s60, %s63
      %p72 = scmp.eq.s32.totalorder %s20, 3
      %p73 = por %p71, %p72
      %p74 = scmp.ne.s32.totalorder %s63, %s64
      %p75 = scmp.eq.s32.totalorder %s20, 0
      %p76 = por %p74, %p75
      %p77 = scmp.ne.s32.totalorder %s63, %s64
      %p78 = scmp.eq.s32.totalorder %s21, 3
      %p79 = por %p77, %p78
      %p81 = scmp.ne.s32.totalorder %s64, %s80
      %p82 = scmp.eq.s32.totalorder %s21, 0
      %p83 = por %p81, %p82
      %s84 = ssub.s32 %s22, %s34
      %p85 = scmp.eq.s32.totalorder %s84, 0
      %s87 = sadd.s32 %s86, 1
      %s88 = scalar_select %p85, %s86, %s87
      %p91 = pneg %p85
      %p92 = scmp.eq.s32.totalorder %s15, 3
      %p93 = por %p91, %p92
      %p94 = scmp.ne.s32.totalorder %s86, %s89
      %p95 = scmp.eq.s32.totalorder %s15, 0
      %p96 = por %p94, %p95
      %p97 = scmp.ne.s32.totalorder %s86, %s89
      %p98 = scmp.eq.s32.totalorder %s20, 3
      %p99 = por %p97, %p98
      %p100 = scmp.ne.s32.totalorder %s89, %s90
      %p101 = scmp.eq.s32.totalorder %s20, 0
      %p102 = por %p100, %p101
      %p103 = scmp.ne.s32.totalorder %s89, %s90
      %p104 = scmp.eq.s32.totalorder %s21, 3
      %p105 = por %p103, %p104
      %p107 = scmp.ne.s32.totalorder %s90, %s106
      %p108 = scmp.eq.s32.totalorder %s21, 0
      %p109 = por %p107, %p108
      %p110 = scmp.le.s32.totalorder 1, %s15
      %p111 = scmp.lt.s32.totalorder %s15, 5
      %p112 = pnand %p110, %p111
      %p113 = pneg %p112
      // Predicated region
      $region9: #{tpu_custom_call.1} parent=5 // pred_check
        _
      $region10: #{tpu_custom_call.1} parent=5 // pred_check_branch
        %115 = sbr.rel (%p112) target = $region12
      $region11: #{tpu_custom_call.1} parent=5 // pred_region
        %s116 = ssub.s32 %s15, 1
        // Predicated region
        $region13: #{tpu_custom_call.1} parent=11 // pred_check
          %p117 = pneg %p48
        $region14: #{tpu_custom_call.1} parent=11 // pred_check_branch
          %119 = sbr.rel (%p117) target = $region16
        $region15: #{tpu_custom_call.1} parent=11 // pred_region
          %s121 = ssub.s32 16, 16
          %122 = vsyncadd [#allocation7], %s121
          %125 = dma.hbm_to_smem %s0, 16, [#allocation4], [#allocation7]
        $region16: #{tpu_custom_call.1} parent=11 // pred_fallthru
          _
      $region12: #{tpu_custom_call.1} parent=5 // pred_fallthru
        _
      %p126 = scmp.lt.s32.totalorder %s15, 4
      // Predicated region
      $region17: #{tpu_custom_call.1} parent=5 // pred_check
        %p127 = pneg %p126
      $region18: #{tpu_custom_call.1} parent=5 // pred_check_branch
        %129 = sbr.rel (%p127) target = $region20
      $region19: #{tpu_custom_call.1} parent=5 // pred_region
        // Predicated region
        $region21: #{tpu_custom_call.1} parent=19 // pred_check
          %p130 = pneg %p70
        $region22: #{tpu_custom_call.1} parent=19 // pred_check_branch
          %132 = sbr.rel (%p130) target = $region24
        $region23: #{tpu_custom_call.1} parent=19 // pred_region
          %s133 = sand.u32 %s60, 1
          %s134 = scalar_lea.sflag [#allocation5], %s133
          %s135 = sand.u32 %s60, 1
          %s136 = smul.addr %s135, 32
          %s137 = scalar_lea.vmem [#allocation8], %s136
          %s138 = smul.u32 2, %s23
          %s140 = ssub.s32 512, 512
          %141 = vsyncadd %s134, %s140
          %s142 = smul.addr %s138, 2
          %s143 = smul.addr %s22, 8
          %s144 = sadd.s32 %s142, %s143
          %s145 = smul.addr %s144, 128
          %s146 = scalar_lea.hbm %s1, %s145
          %s147 = sshll.u32 %s137, 4
          %s148 = int_to_ptr.vmem [resolvable:$true] %s147
          %153 = dma.hbm_to_vmem [thread:$0]  %s146, 512, %s148, %s134, 128, 128, 8
        $region24: #{tpu_custom_call.1} parent=19 // pred_fallthru
          _
      $region20: #{tpu_custom_call.1} parent=5 // pred_fallthru
        _
      %p154 = scmp.le.s32.totalorder 1, %s15
      %p155 = scmp.lt.s32.totalorder %s15, 5
      %p156 = pnand %p154, %p155
      %p157 = pneg %p156
      // Predicated region
      $region25: #{tpu_custom_call.1} parent=5 // pred_check
        _
      $region26: #{tpu_custom_call.1} parent=5 // pred_check_branch
        %159 = sbr.rel (%p156) target = $region28
      $region27: #{tpu_custom_call.1} parent=5 // pred_region
        %s160 = ssub.s32 %s15, 1
        // Predicated region
        $region29: #{tpu_custom_call.1} parent=27 // pred_check
          %p161 = pneg %p48
        $region30: #{tpu_custom_call.1} parent=27 // pred_check_branch
          %163 = sbr.rel (%p161) target = $region32
        $region31: #{tpu_custom_call.1} parent=27 // pred_region
          %164 = dma.done [#allocation7], 16
        $region32: #{tpu_custom_call.1} parent=27 // pred_fallthru
          _
        %s165 = sand.u32 %s63, 1
        %s166 = scalar_lea.sflag [#allocation5], %s165
        %s167 = sand.u32 %s63, 1
        %s168 = smul.addr %s167, 32
        %s169 = scalar_lea.vmem [#allocation8], %s168
        // Predicated region
        $region33: #{tpu_custom_call.1} parent=27 // pred_check
          %p170 = pneg %p76
        $region34: #{tpu_custom_call.1} parent=27 // pred_check_branch
          %172 = sbr.rel (%p170) target = $region36
        $region35: #{tpu_custom_call.1} parent=27 // pred_region
          %173 = dma.done %s166, 512
        $region36: #{tpu_custom_call.1} parent=27 // pred_fallthru
          _
        %174 = sfence
        %p175 = pneg %p48
        %p176 = pneg %p45
        %s177 = sand.u32 %s63, 1
        %s178 = scalar_lea.sflag [#allocation5], %s177
        %s179 = sand.u32 %s63, 1
        %s180 = smul.addr %s179, 32
        %s181 = scalar_lea.vmem [#allocation8], %s180
        %p182 = pneg %p76
        %p183 = pneg %p73
        %p184 = pneg %p102
        %p185 = pneg %p99
        %s186 = sand.u32 %s89, 1
        %s187 = scalar_lea.sflag [#allocation6], %s186
        %s188 = sand.u32 %s89, 1
        %s189 = smul.addr %s188, 16
        %s190 = scalar_lea.vmem [#allocation9], %s189
        %s191 = smul.u32 2, %s25
        %p192 = scmp.eq.s32.totalorder %s25, 0
        // Predicated region
        $region37: #{tpu_custom_call.1} parent=27 // pred_check
          %p193 = pneg %p192
        $region38: #{tpu_custom_call.1} parent=27 // pred_check_branch
          %195 = sbr.rel (%p193) target = $region40
        $region39: #{tpu_custom_call.1} parent=27 // pred_region
          %vm196 = vcmask 130048
          %197 = vst.msk [vmem:[#allocation2] sm:$0xff] %vm196, 0.0
          %198 = vst.msk [vmem:[#allocation2 + $0x8] sm:$0xff] %vm196, 0.0
          %199 = vst.msk [vmem:[#allocation3] sm:$0xff] %vm196, -inf
          %200 = vst.msk [vmem:[#allocation3 + $0x8] sm:$0xff] %vm196, -inf
        $region40: #{tpu_custom_call.1} parent=27 // pred_fallthru
          _
        %v201 = vld [vmem:[#allocation2] sm:$0xff]
        %v202 = vld [vmem:[#allocation2 + $0x8] sm:$0xff]
        %v203 = vld [vmem:[#allocation3] sm:$0xff]
        %v204 = vld [vmem:[#allocation3 + $0x8] sm:$0xff]
        %v205 = vld [vmem:[%s169] sm:$0xff]
        %v206 = vld [vmem:[%s169 + $0x8] sm:$0xff]
        %v207 = vadd.f32 %v201, %v205
        %v208 = vadd.f32 %v202, %v206
        %v209 = vmax.f32 %v203, %v205
        %v210 = vmax.f32 %v204, %v206
        %s211 = scalar_lea.vmem %s169, 16 [#allocation8]
        %v212 = vld [vmem:[%s211] sm:$0xff]
        %v213 = vld [vmem:[%s211 + $0x8] sm:$0xff]
        %v214 = vadd.f32 %v207, %v212
        %v215 = vadd.f32 %v208, %v213
        %v216 = vmax.f32 %v209, %v212
        %v217 = vmax.f32 %v210, %v213
        %vm218 = vcmask 130048
        %219 = vst.msk [vmem:[#allocation2] sm:$0xff] %vm218, %v214
        %220 = vst.msk [vmem:[#allocation2 + $0x8] sm:$0xff] %vm218, %v215
        %221 = vst.msk [vmem:[#allocation3] sm:$0xff] %vm218, %v216
        %222 = vst.msk [vmem:[#allocation3 + $0x8] sm:$0xff] %vm218, %v217
        %p223 = scmp.eq.s32.totalorder %s25, 1
        // Predicated region
        $region41: #{tpu_custom_call.1} parent=27 // pred_check
          %p224 = pneg %p223
        $region42: #{tpu_custom_call.1} parent=27 // pred_check_branch
          %226 = sbr.rel (%p224) target = $region44
        $region43: #{tpu_custom_call.1} parent=27 // pred_region
          %v227 = vlaneseq
          %v228 = vshrl.u32 %v227, 7
          %v229 = vadd.s32 %v228, 8
          %v230 = vlaneseq
          %v231 = vand.u32 %v230, 127
          %v232 = vadd.s32 %v228, 4294967295
          %v233 = vadd.s32 %v229, 4294967295
          %vm234 = vcmp.ge.s32.totalorder %v232, 0
          %vm235 = vcmp.ge.s32.totalorder %v233, 0
          %vm236 = vcmp.lt.s32.totalorder %v232, 16
          %vm237 = vcmp.lt.s32.totalorder %v233, 16
          %vm238 = vmand %vm234, %vm236
          %vm239 = vmand %vm235, %vm237
          %v240 = vadd.s32 %v228, 1
          %v241 = vadd.s32 %v229, 1
          %vm242 = vcmp.ge.s32.totalorder %v240, 0
          %vm243 = vcmp.ge.s32.totalorder %v241, 0
          %vm244 = vcmp.lt.s32.totalorder %v240, 16
          %vm245 = vcmp.lt.s32.totalorder %v241, 16
          %vm246 = vmand %vm242, %vm244
          %vm247 = vmand %vm243, %vm245
          %v248 = vadd.s32 %v231, 4294967295
          %vm249 = vcmp.ge.s32.totalorder %v248, 0
          %vm250 = vcmp.lt.s32.totalorder %v248, 16
          %vm251 = vmand %vm249, %vm250
          %v252 = vadd.s32 %v231, 1
          %vm253 = vcmp.ge.s32.totalorder %v252, 0
          %vm254 = vcmp.lt.s32.totalorder %v252, 16
          %vm255 = vmand %vm253, %vm254
          %v256 = vrot.slane %v214, 7
          %v257 = vrot.slane %v215, 7
          %vm258 = vcmp.lt.s32.totalorder %v228, 1
          %v259 = vsel %vm258, %v256, %v257
          %v260 = vsel %vm258, %v257, %v256
          %v261 = vrot.slane %v216, 7
          %v262 = vrot.slane %v217, 7
          %v263 = vsel %vm258, %v261, %v262
          %v264 = vsel %vm258, %v262, %v261
          %vm265 = vcmask 1047680
          %266 = vrot.lane.b32.xlu0 %v260, 16
          %v267 = vpop.permute.xlu0 %266
          %v268 = vsel %vm265, %v267, %v260
          %269 = vrot.lane.b32.xlu0 %v259, 16
          %v270 = vpop.permute.xlu0 %269
          %v271 = vsel %vm265, %v270, %v259
          %272 = vrot.lane.b32.xlu0 %v268, 16
          %v273 = vpop.permute.xlu0 %272
          %274 = vrot.lane.b32.xlu0 %v271, 16
          %v275 = vpop.permute.xlu0 %274
          %v276 = vsel %vm265, %v273, %v260
          %v277 = vsel %vm265, %v275, %v259
          %278 = vrot.lane.b32.xlu0 %v264, 16
          %v279 = vpop.permute.xlu0 %278
          %v280 = vsel %vm265, %v279, %v264
          %281 = vrot.lane.b32.xlu0 %v263, 16
          %v282 = vpop.permute.xlu0 %281
          %v283 = vsel %vm265, %v282, %v263
          %284 = vrot.lane.b32.xlu0 %v280, 16
          %v285 = vpop.permute.xlu0 %284
          %286 = vrot.lane.b32.xlu0 %v283, 16
          %v287 = vpop.permute.xlu0 %286
          %v288 = vsel %vm265, %v285, %v264
          %v289 = vsel %vm265, %v287, %v263
          %s290 = sld [smem:[#allocation4]]
          %v291 = vstv %s290
          %v292 = vmul.f32 %v291, %v276
          %v293 = vmul.f32 %v291, %v277
          %s294 = sld [smem:[#allocation4 + $0x9]]
          %v295 = vstv %s294
          %v296 = vmul.f32 %v295, %v288
          %v297 = vmul.f32 %v295, %v289
          %v298 = vadd.f32 %v292, %v296
          %v299 = vadd.f32 %v293, %v297
          %vm300 = vmand %vm238, %vm251
          %vm301 = vmand %vm239, %vm251
          %304 = vrot.lane.b32.xlu0 %v298, 113
          %v305 = vpop.permute.xlu0 %304
          %306 = vrot.lane.b32.xlu0 %v299, 113
          %v307 = vpop.permute.xlu0 %306
          %v310 = vsel %vm300, %v305, 0.0
          %v311 = vsel %vm301, %v307, 0.0
          %v312 = vadd.f32 %v310, 0.0
          %v313 = vadd.f32 %v311, 0.0
          %s314 = sld [smem:[#allocation4 + $0x1]]
          %v315 = vstv %s314
          %v316 = vmul.f32 %v315, %v260
          %v317 = vmul.f32 %v315, %v259
          %s318 = sld [smem:[#allocation4 + $0xa]]
          %v319 = vstv %s318
          %v320 = vmul.f32 %v319, %v264
          %v321 = vmul.f32 %v319, %v263
          %v322 = vadd.f32 %v316, %v320
          %v323 = vadd.f32 %v317, %v321
          %v324 = vsel %vm238, %v322, 0.0
          %v325 = vsel %vm239, %v323, 0.0
          %v326 = vadd.f32 %v312, %v324
          %v327 = vadd.f32 %v313, %v325
          %s328 = sld [smem:[#allocation4 + $0x2]]
          %v329 = vstv %s328
          %v330 = vmul.f32 %v329, %v276
          %v331 = vmul.f32 %v329, %v277
          %s332 = sld [smem:[#allocation4 + $0xb]]
          %v333 = vstv %s332
          %v334 = vmul.f32 %v333, %v288
          %v335 = vmul.f32 %v333, %v289
          %v336 = vadd.f32 %v330, %v334
          %v337 = vadd.f32 %v331, %v335
          %vm338 = vmand %vm238, %vm255
          %vm339 = vmand %vm239, %vm255
          %342 = vrot.lane.b32.xlu0 %v336, 127
          %v343 = vpop.permute.xlu0 %342
          %344 = vrot.lane.b32.xlu0 %v337, 127
          %v345 = vpop.permute.xlu0 %344
          %v348 = vsel %vm338, %v343, 0.0
          %v349 = vsel %vm339, %v345, 0.0
          %v350 = vadd.f32 %v326, %v348
          %v351 = vadd.f32 %v327, %v349
          %352 = vrot.lane.b32.xlu0 %v214, 16
          %v353 = vpop.permute.xlu0 %352
          %v354 = vsel %vm265, %v353, %v214
          %355 = vrot.lane.b32.xlu0 %v215, 16
          %v356 = vpop.permute.xlu0 %355
          %v357 = vsel %vm265, %v356, %v215
          %358 = vrot.lane.b32.xlu0 %v354, 16
          %v359 = vpop.permute.xlu0 %358
          %360 = vrot.lane.b32.xlu0 %v357, 16
          %v361 = vpop.permute.xlu0 %360
          %v362 = vsel %vm265, %v359, %v214
          %v363 = vsel %vm265, %v361, %v215
          %364 = vrot.lane.b32.xlu0 %v216, 16
          %v365 = vpop.permute.xlu0 %364
          %v366 = vsel %vm265, %v365, %v216
          %367 = vrot.lane.b32.xlu0 %v217, 16
          %v368 = vpop.permute.xlu0 %367
          %v369 = vsel %vm265, %v368, %v217
          %370 = vrot.lane.b32.xlu0 %v366, 16
          %v371 = vpop.permute.xlu0 %370
          %372 = vrot.lane.b32.xlu0 %v369, 16
          %v373 = vpop.permute.xlu0 %372
          %v374 = vsel %vm265, %v371, %v216
          %v375 = vsel %vm265, %v373, %v217
          %s376 = sld [smem:[#allocation4 + $0x3]]
          %v377 = vstv %s376
          %v378 = vmul.f32 %v377, %v362
          %v379 = vmul.f32 %v377, %v363
          %s380 = sld [smem:[#allocation4 + $0xc]]
          %v381 = vstv %s380
          %v382 = vmul.f32 %v381, %v374
          %v383 = vmul.f32 %v381, %v375
          %v384 = vadd.f32 %v378, %v382
          %v385 = vadd.f32 %v379, %v383
          %388 = vrot.lane.b32.xlu0 %v384, 113
          %v389 = vpop.permute.xlu0 %388
          %390 = vrot.lane.b32.xlu0 %v385, 113
          %v391 = vpop.permute.xlu0 %390
          %v394 = vsel %vm251, %v389, 0.0
          %v395 = vsel %vm251, %v391, 0.0
          %v396 = vadd.f32 %v350, %v394
          %v397 = vadd.f32 %v351, %v395
          %s398 = sld [smem:[#allocation4 + $0x4]]
          %v399 = vstv %s398
          %v400 = vmul.f32 %v399, %v214
          %v401 = vmul.f32 %v399, %v215
          %s402 = sld [smem:[#allocation4 + $0xd]]
          %v403 = vstv %s402
          %v404 = vmul.f32 %v403, %v216
          %v405 = vmul.f32 %v403, %v217
          %v406 = vadd.f32 %v400, %v404
          %v407 = vadd.f32 %v401, %v405
          %v408 = vadd.f32 %v396, %v406
          %v409 = vadd.f32 %v397, %v407
          %s410 = sld [smem:[#allocation4 + $0x5]]
          %v411 = vstv %s410
          %v412 = vmul.f32 %v411, %v362
          %v413 = vmul.f32 %v411, %v363
          %s414 = sld [smem:[#allocation4 + $0xe]]
          %v415 = vstv %s414
          %v416 = vmul.f32 %v415, %v374
          %v417 = vmul.f32 %v415, %v375
          %v418 = vadd.f32 %v412, %v416
          %v419 = vadd.f32 %v413, %v417
          %422 = vrot.lane.b32.xlu0 %v418, 127
          %v423 = vpop.permute.xlu0 %422
          %424 = vrot.lane.b32.xlu0 %v419, 127
          %v425 = vpop.permute.xlu0 %424
          %v428 = vsel %vm255, %v423, 0.0
          %v429 = vsel %vm255, %v425, 0.0
          %v430 = vadd.f32 %v408, %v428
          %v431 = vadd.f32 %v409, %v429
          %v432 = vrot.slane %v214, 1
          %v433 = vrot.slane %v215, 1
          %vm434 = vcmp.lt.s32.totalorder %v228, 7
          %v435 = vsel %vm434, %v432, %v433
          %v436 = vsel %vm434, %v433, %v432
          %v437 = vrot.slane %v216, 1
          %v438 = vrot.slane %v217, 1
          %v439 = vsel %vm434, %v437, %v438
          %v440 = vsel %vm434, %v438, %v437
          %441 = vrot.lane.b32.xlu0 %v435, 16
          %v442 = vpop.permute.xlu0 %441
          %v443 = vsel %vm265, %v442, %v435
          %444 = vrot.lane.b32.xlu0 %v436, 16
          %v445 = vpop.permute.xlu0 %444
          %v446 = vsel %vm265, %v445, %v436
          %447 = vrot.lane.b32.xlu0 %v443, 16
          %v448 = vpop.permute.xlu0 %447
          %449 = vrot.lane.b32.xlu0 %v446, 16
          %v450 = vpop.permute.xlu0 %449
          %v451 = vsel %vm265, %v448, %v435
          %v452 = vsel %vm265, %v450, %v436
          %453 = vrot.lane.b32.xlu0 %v439, 16
          %v454 = vpop.permute.xlu0 %453
          %v455 = vsel %vm265, %v454, %v439
          %456 = vrot.lane.b32.xlu0 %v440, 16
          %v457 = vpop.permute.xlu0 %456
          %v458 = vsel %vm265, %v457, %v440
          %459 = vrot.lane.b32.xlu0 %v455, 16
          %v460 = vpop.permute.xlu0 %459
          %461 = vrot.lane.b32.xlu0 %v458, 16
          %v462 = vpop.permute.xlu0 %461
          %v463 = vsel %vm265, %v460, %v439
          %v464 = vsel %vm265, %v462, %v440
          %s465 = sld [smem:[#allocation4 + $0x6]]
          %v466 = vstv %s465
          %v467 = vmul.f32 %v466, %v451
          %v468 = vmul.f32 %v466, %v452
          %s469 = sld [smem:[#allocation4 + $0xf]]
          %v470 = vstv %s469
          %v471 = vmul.f32 %v470, %v463
          %v472 = vmul.f32 %v470, %v464
          %v473 = vadd.f32 %v467, %v471
          %v474 = vadd.f32 %v468, %v472
          %vm475 = vmand %vm246, %vm251
          %vm476 = vmand %vm247, %vm251
          %479 = vrot.lane.b32.xlu0 %v473, 113
          %v480 = vpop.permute.xlu0 %479
          %481 = vrot.lane.b32.xlu0 %v474, 113
          %v482 = vpop.permute.xlu0 %481
          %v485 = vsel %vm475, %v480, 0.0
          %v486 = vsel %vm476, %v482, 0.0
          %v487 = vadd.f32 %v430, %v485
          %v488 = vadd.f32 %v431, %v486
          %s489 = sld [smem:[#allocation4 + $0x7]]
          %v490 = vstv %s489
          %v491 = vmul.f32 %v490, %v435
          %v492 = vmul.f32 %v490, %v436
          %s493 = sld [smem:[#allocation4 + $0x10]]
          %v494 = vstv %s493
          %v495 = vmul.f32 %v494, %v439
          %v496 = vmul.f32 %v494, %v440
          %v497 = vadd.f32 %v491, %v495
          %v498 = vadd.f32 %v492, %v496
          %v499 = vsel %vm246, %v497, 0.0
          %v500 = vsel %vm247, %v498, 0.0
          %v501 = vadd.f32 %v487, %v499
          %v502 = vadd.f32 %v488, %v500
          %s503 = sld [smem:[#allocation4 + $0x8]]
          %v504 = vstv %s503
          %v505 = vmul.f32 %v504, %v451
          %v506 = vmul.f32 %v504, %v452
          %s507 = sld [smem:[#allocation4 + $0x11]]
          %v508 = vstv %s507
          %v509 = vmul.f32 %v508, %v463
          %v510 = vmul.f32 %v508, %v464
          %v511 = vadd.f32 %v505, %v509
          %v512 = vadd.f32 %v506, %v510
          %vm513 = vmand %vm246, %vm255
          %vm514 = vmand %vm247, %vm255
          %517 = vrot.lane.b32.xlu0 %v511, 127
          %v518 = vpop.permute.xlu0 %517
          %519 = vrot.lane.b32.xlu0 %v512, 127
          %v520 = vpop.permute.xlu0 %519
          %v523 = vsel %vm513, %v518, 0.0
          %v524 = vsel %vm514, %v520, 0.0
          %v525 = vadd.f32 %v501, %v523
          %v526 = vadd.f32 %v502, %v524
          %527 = vst.msk [vmem:[%s190] sm:$0xff] %vm218, %v525
          %528 = vst.msk [vmem:[%s190 + $0x8] sm:$0xff] %vm218, %v526
        $region44: #{tpu_custom_call.1} parent=27 // pred_fallthru
          _
        %s529 = sand.u32 %s89, 1
        %s530 = scalar_lea.sflag [#allocation6], %s529
        %s531 = sand.u32 %s89, 1
        %s532 = smul.addr %s531, 16
        %s533 = scalar_lea.vmem [#allocation9], %s532
        // Predicated region
        $region45: #{tpu_custom_call.1} parent=27 // pred_check
          %p534 = pneg %p99
        $region46: #{tpu_custom_call.1} parent=27 // pred_check_branch
          %536 = sbr.rel (%p534) target = $region48
        $region47: #{tpu_custom_call.1} parent=27 // pred_region
          %s538 = ssub.s32 256, 256
          %539 = vsyncadd %s530, %s538
          %s540 = smul.addr %s24, 2
          %s541 = smul.addr %s540, 128
          %s542 = scalar_lea.hbm %s2, %s541
          %s543 = sshll.u32 %s533, 4
          %s544 = int_to_ptr.vmem [resolvable:$true] %s543
          %549 = dma.vmem_to_hbm [thread:$0]  %s544, 256, %s542, %s530, 128, 128, 8
        $region48: #{tpu_custom_call.1} parent=27 // pred_fallthru
          _
      $region28: #{tpu_custom_call.1} parent=5 // pred_fallthru
        _
      %p550 = scmp.le.s32.totalorder 2, %s15
      // Predicated region
      $region49: #{tpu_custom_call.1} parent=5 // pred_check
        %p551 = pneg %p550
      $region50: #{tpu_custom_call.1} parent=5 // pred_check_branch
        %553 = sbr.rel (%p551) target = $region52
      $region51: #{tpu_custom_call.1} parent=5 // pred_region
        %s554 = ssub.s32 %s15, 2
        // Predicated region
        $region53: #{tpu_custom_call.1} parent=51 // pred_check
          %p555 = pneg %p105
        $region54: #{tpu_custom_call.1} parent=51 // pred_check_branch
          %557 = sbr.rel (%p555) target = $region56
        $region55: #{tpu_custom_call.1} parent=51 // pred_region
          %s558 = sand.u32 %s90, 1
          %s559 = scalar_lea.sflag [#allocation6], %s558
          %s560 = sand.u32 %s90, 1
          %s561 = smul.addr %s560, 16
          %s562 = scalar_lea.vmem [#allocation9], %s561
          %563 = dma.done %s559, 256
        $region56: #{tpu_custom_call.1} parent=51 // pred_fallthru
          _
      $region52: #{tpu_custom_call.1} parent=5 // pred_fallthru
        _
    $region6: #{tpu_custom_call.1} parent=1 // loop_footer
      %s19 = sadd.s32 1, %s15
    $region7: #{tpu_custom_call.1} parent=1 // loop_footer_branch
      %14 = sbr.rel target = $region3
    $region8: #{tpu_custom_call.1} parent=1 // loop_exit
      _
    %564 = vsyncpa [#allocation5], 1
    %s565 = scalar_lea.sflag [#allocation5], 1
    %566 = vsyncpa %s565, 1
    %567 = vsyncpa [#allocation6], 1
    %s568 = scalar_lea.sflag [#allocation6], 1
    %569 = vsyncpa %s568, 1
    %570 = vsyncpa [#allocation7], 1
    %s571 = scalar_lea.sflag [#allocation7], 1
    %572 = vsyncpa %s571, 1

</llo_original>
